<compile_context>
chip_gen: v6e
topology: v6e:2x2x1
jax: 0.10.0
libtpu: 0.0.40
codegen_flags: <defaults>
</compile_context>

<pallas_src>
from collections import namedtuple

import numpy as np
import jax
import jax.numpy as jnp
from jax.experimental import pallas as pl
from jax.experimental.pallas import tpu as pltpu

# ---- model dims (match PyTorch __init__ defaults) ---------------------------
INPUT_DIMS = 4
STATE_DIM = INPUT_DIMS * 3          # 12
FC1_DIMS = 64
FC2_DIMS = 64
NUM_PLAYER = 2

# ---- TPU-padded dims ---------------------------------------------------------
PAD = 128                 # lane-dense width for hidden / output feature axes
MAX_ROW_TILE = 256        # rows of activations per grid step (sweepable 128-512)
MIN_ROWS = 16             # smallest batch bucket (=> grid of 2 x 8-row tiles)

# packed-parameter layout (all offsets sublane-aligned):
#   rows [  0, 16)  = W1  (only first 12 rows meaningful)
#   rows [ 16,144)  = W2
#   rows [144,272)  = W3
#   rows 272/273/274 = b1/b2/b3, rows 275..279 zero padding
W1_OFF, W1_ROWS = 0, 16
W2_OFF = W1_OFF + W1_ROWS           # 16
W3_OFF = W2_OFF + PAD               # 144
BIAS_OFF = W3_OFF + PAD             # 272
PACK_ROWS = BIAS_OFF + 8            # 280


# ---- fused 3-layer MLP kernel ------------------------------------------------
def _mlp_kernel(x_ref, p_ref, o_ref):
    x = x_ref[...]                                    # (tile, 12)  raw states
    w1 = p_ref[W1_OFF:W1_OFF + STATE_DIM, :]          # (12, 128)
    w2 = p_ref[W2_OFF:W2_OFF + PAD, :]                # (128, 128)
    w3 = p_ref[W3_OFF:W3_OFF + PAD, :]                # (128, 128)
    bias = p_ref[BIAS_OFF:BIAS_OFF + 8, :]            # aligned (8, 128) load
    b1 = bias[0:1, :]                                 # (1, 128) -> broadcast add
    b2 = bias[1:2, :]
    b3 = bias[2:3, :]

    h1 = jnp.maximum(
        jnp.dot(x, w1, preferred_element_type=jnp.float32) + b1, 0.0)
    h2 = jnp.maximum(
        jnp.dot(h1, w2, preferred_element_type=jnp.float32) + b2, 0.0)
    o_ref[...] = jnp.dot(h2, w3, preferred_element_type=jnp.float32) + b3


@jax.jit
def _forward_padded(states_pad, packed_params):
    """states_pad: (rows, 12) with rows a power-of-two bucket >= 16.

    Returns a lane-dense (rows, 128) slab; lanes [0, 2) hold the values.
    """
    rows = states_pad.shape[0]
    # tile <= MAX_ROW_TILE, grid >= 2 so both v7x TensorCores get work.
    tile = min(MAX_ROW_TILE, max(8, rows // 2))
    grid = rows // tile
    return pl.pallas_call(
        _mlp_kernel,
        out_shape=jax.ShapeDtypeStruct((rows, PAD), jnp.float32),
        grid=(grid,),
        in_specs=[
            pl.BlockSpec((tile, STATE_DIM), lambda i: (i, 0)),   # raw states
            pl.BlockSpec((PACK_ROWS, PAD), lambda i: (0, 0)),    # resident params
        ],
        out_specs=pl.BlockSpec((tile, PAD), lambda i: (i, 0)),
        compiler_params=pltpu.CompilerParams(
            dimension_semantics=("parallel",)),
    )(states_pad, packed_params)


def _row_bucket(batch):
    """Round the batch up to a power-of-two bucket (bounds recompiles)."""
    return max(MIN_ROWS, 1 << max(0, batch - 1).bit_length())


def vnetwork_gops_forward_batch(states, packed_params):
    """Batched forward. states: (B, 12) float32.  Returns (B, 2)."""
    b = states.shape[0]
    rows = _row_bucket(b)
    states_pad = jnp.zeros((rows, STATE_DIM), jnp.float32).at[:b, :].set(states)
    return _forward_padded(states_pad, packed_params)[:b, :NUM_PLAYER]


def vnetwork_gops_forward(state_vec, packed_params):
    """Single-state forward (matches the PyTorch module). state_vec: (12,) -> (2,)."""
    return vnetwork_gops_forward_batch(state_vec[None, :], packed_params)[0]


# ---- one-time parameter packing (hoisted out of the forward pass) ------------
def prepare_params(params):
    """Pack PyTorch-layout params into one lane-dense (280, 128) f32 buffer."""
    packed = np.zeros((PACK_ROWS, PAD), np.float32)
    # nn.Linear weight is (out, in); kernel computes x @ W with W = (in, out).
    packed[W1_OFF:W1_OFF + STATE_DIM, :FC1_DIMS] = np.asarray(params["w1"]).T
    packed[W2_OFF:W2_OFF + FC1_DIMS, :FC2_DIMS] = np.asarray(params["w2"]).T
    packed[W3_OFF:W3_OFF + FC2_DIMS, :NUM_PLAYER] = np.asarray(params["w3"]).T
    packed[BIAS_OFF + 0, :FC1_DIMS] = np.asarray(params["b1"])
    packed[BIAS_OFF + 1, :FC2_DIMS] = np.asarray(params["b2"])
    packed[BIAS_OFF + 2, :NUM_PLAYER] = np.asarray(params["b3"])
    return jnp.asarray(packed)


# ---- deterministic parameter init (PyTorch nn.Linear default scheme) ---------
def init_params(key):
    def linear_init(k, out_f, in_f):
        kw, kb = jax.random.split(k)
        bound = 1.0 / np.sqrt(in_f)
        w = jax.random.uniform(kw, (out_f, in_f), jnp.float32, -bound, bound)
        b = jax.random.uniform(kb, (out_f,), jnp.float32, -bound, bound)
        return w, b

    k1, k2, k3 = jax.random.split(key, 3)
    w1, b1 = linear_init(k1, FC1_DIMS, STATE_DIM)
    w2, b2 = linear_init(k2, FC2_DIMS, FC1_DIMS)
    w3, b3 = linear_init(k3, NUM_PLAYER, FC2_DIMS)
    return {"w1": w1, "b1": b1, "w2": w2, "b2": b2, "w3": w3, "b3": b3}


# ---- observation preprocessing (pure host glue, as in the PyTorch forward) ---
Observation = namedtuple("Observation", ["prize_cards", "player_cards", "opponent_cards"])


def build_state_vector(obs):
    def pad(cards):
        cards = list(cards)
        while len(cards) < INPUT_DIMS:
            cards.append(0)
        return cards

    return np.array(pad(obs.prize_cards) + pad(obs.player_cards) + pad(obs.opponent_cards),
                    dtype=np.float32)                                  # (12,)


def reference_forward(state_vec, params):
    # plain-JAX reference for sanity checking (state_vec: (12,))
    h1 = jnp.maximum(state_vec @ params["w1"].T + params["b1"], 0.0)
    h2 = jnp.maximum(h1 @ params["w2"].T + params["b2"], 0.0)
    return h2 @ params["w3"].T + params["b3"]


if __name__ == "__main__":
    key = jax.random.PRNGKey(0)
    pkey, okey, bkey = jax.random.split(key, 3)
    params = init_params(pkey)
    packed = prepare_params(params)        # one-time pack; reused every call

    # small deterministic example observation (GOPS mid-game: lists shorter than input_dims)
    cards = np.asarray(jax.random.randint(okey, (9,), 1, 14))
    obs = Observation(
        prize_cards=[int(cards[0]), int(cards[1]), int(cards[2])],
        player_cards=[int(cards[3]), int(cards[4])],
        opponent_cards=[int(cards[5]), int(cards[6]), int(cards[7]), int(cards[8])],
    )

    # --- single-state forward (matches the PyTorch module) ---
    state_vec = build_state_vector(obs)                               # (12,)
    out = vnetwork_gops_forward(jnp.asarray(state_vec), packed)       # (2,)
    out = jax.block_until_ready(out)

    ref = reference_forward(jnp.asarray(state_vec), params)
    np.testing.assert_allclose(np.asarray(out), np.asarray(ref), rtol=1e-5, atol=1e-5)

    # --- batched forward (amortizes launch/DMA overhead across states) ---
    batch_states = jax.random.uniform(bkey, (20, STATE_DIM), jnp.float32, 0.0, 13.0)
    out_b = jax.block_until_ready(vnetwork_gops_forward_batch(batch_states, packed))
    ref_b = jax.vmap(lambda s: reference_forward(s, params))(batch_states)
    np.testing.assert_allclose(np.asarray(out_b), np.asarray(ref_b), rtol=1e-5, atol=1e-5)

    print("KERNEL_OK")
</pallas_src>

<mosaic_0001>
module attributes {stable_mosaic.version = 11 : i64} {
  func.func @_mlp_kernel(%arg0: i32, %arg1: memref<8x12xf32, #tpu.memory_space<vmem>>, %arg2: memref<280x128xf32, #tpu.memory_space<vmem>>, %arg3: memref<8x128xf32, #tpu.memory_space<vmem>>) attributes {dimension_semantics = [#tpu.dimension_semantics<parallel>], iteration_bounds = array<i64: 2>, scalar_prefetch = 0 : i64, scratch_operands = 0 : i64, tpu.core_type = #tpu.core_type<tc>, window_params = [{transform_indices = @transform_0, window_bounds = array<i64: 8, 12>}, {pipeline_mode = #tpu.pipeline_mode<synchronous>, transform_indices = @transform_1, window_bounds = array<i64: 280, 128>}, {transform_indices = @transform_2, window_bounds = array<i64: 8, 128>}]} {
    %c0 = arith.constant 0 : index
    %c0_0 = arith.constant 0 : index
    %0 = vector.load %arg1[%c0, %c0_0] : memref<8x12xf32, #tpu.memory_space<vmem>>, vector<8x12xf32>
    %c0_1 = arith.constant 0 : index
    %c0_2 = arith.constant 0 : index
    %1 = vector.load %arg2[%c0_1, %c0_2] : memref<280x128xf32, #tpu.memory_space<vmem>>, vector<12x128xf32>
    %c16 = arith.constant 16 : index
    %c0_3 = arith.constant 0 : index
    %2 = vector.load %arg2[%c16, %c0_3] : memref<280x128xf32, #tpu.memory_space<vmem>>, vector<128x128xf32>
    %c144 = arith.constant 144 : index
    %c0_4 = arith.constant 0 : index
    %3 = vector.load %arg2[%c144, %c0_4] : memref<280x128xf32, #tpu.memory_space<vmem>>, vector<128x128xf32>
    %c272 = arith.constant 272 : index
    %c0_5 = arith.constant 0 : index
    %4 = vector.load %arg2[%c272, %c0_5] : memref<280x128xf32, #tpu.memory_space<vmem>>, vector<8x128xf32>
    %5 = vector.extract_strided_slice %4 {offsets = [0, 0], sizes = [1, 128], strides = [1, 1]} : vector<8x128xf32> to vector<1x128xf32>
    %6 = vector.extract_strided_slice %4 {offsets = [1, 0], sizes = [1, 128], strides = [1, 1]} : vector<8x128xf32> to vector<1x128xf32>
    %7 = vector.extract_strided_slice %4 {offsets = [2, 0], sizes = [1, 128], strides = [1, 1]} : vector<8x128xf32> to vector<1x128xf32>
    %cst = arith.constant dense<0.000000e+00> : vector<8x128xf32>
    %8 = tpu.matmul %0, %1, %cst {dimension_numbers = #tpu.dot_dimension_numbers<[1], [0], [0], [1], [0, 0, 1, 1], [], []>} : vector<8x12xf32>, vector<12x128xf32>, vector<8x128xf32> -> vector<8x128xf32>
    %9 = vector.broadcast %5 : vector<1x128xf32> to vector<8x128xf32>
    %10 = arith.addf %8, %9 : vector<8x128xf32>
    %cst_6 = arith.constant 0.000000e+00 : f32
    %11 = vector.broadcast %cst_6 : f32 to vector<8x128xf32>
    %12 = arith.maximumf %10, %11 : vector<8x128xf32>
    %cst_7 = arith.constant dense<0.000000e+00> : vector<8x128xf32>
    %13 = tpu.matmul %12, %2, %cst_7 {dimension_numbers = #tpu.dot_dimension_numbers<[1], [0], [0], [1], [0, 0, 1, 1], [], []>} : vector<8x128xf32>, vector<128x128xf32>, vector<8x128xf32> -> vector<8x128xf32>
    %14 = vector.broadcast %6 : vector<1x128xf32> to vector<8x128xf32>
    %15 = arith.addf %13, %14 : vector<8x128xf32>
    %cst_8 = arith.constant 0.000000e+00 : f32
    %16 = vector.broadcast %cst_8 : f32 to vector<8x128xf32>
    %17 = arith.maximumf %15, %16 : vector<8x128xf32>
    %cst_9 = arith.constant dense<0.000000e+00> : vector<8x128xf32>
    %18 = tpu.matmul %17, %3, %cst_9 {dimension_numbers = #tpu.dot_dimension_numbers<[1], [0], [0], [1], [0, 0, 1, 1], [], []>} : vector<8x128xf32>, vector<128x128xf32>, vector<8x128xf32> -> vector<8x128xf32>
    %19 = vector.broadcast %7 : vector<1x128xf32> to vector<8x128xf32>
    %20 = arith.addf %18, %19 : vector<8x128xf32>
    %c0_10 = arith.constant 0 : index
    %c0_11 = arith.constant 0 : index
    %21 = vector.load %arg3[%c0_10, %c0_11] : memref<8x128xf32, #tpu.memory_space<vmem>>, vector<8x128xf32>
    tpu.vector_store %arg3[%c0_10, %c0_11], %20 {strides = array<i32>} : memref<8x128xf32, #tpu.memory_space<vmem>>, vector<8x128xf32>,
    return
  }
  func.func @transform_0(%arg0: i32) -> (i32, i32) {
    %c0_i32 = arith.constant 0 : i32
    %c0_i32_0 = arith.constant 0 : i32
    return %arg0, %c0_i32 : i32, i32
  }
  func.func @transform_1(%arg0: i32) -> (i32, i32) {
    %c0_i32 = arith.constant 0 : i32
    %c0_i32_0 = arith.constant 0 : i32
    %c0_i32_1 = arith.constant 0 : i32
    return %c0_i32, %c0_i32_0 : i32, i32
  }
  func.func @transform_2(%arg0: i32) -> (i32, i32) {
    %c0_i32 = arith.constant 0 : i32
    %c0_i32_0 = arith.constant 0 : i32
    return %arg0, %c0_i32 : i32, i32
  }
}

</mosaic_0001>

<llo_original>
// kernel: _forward_padded.1
$region0: #{_forward_padded.1}
  #allocation0 [shape = 'u32[]', space=smem, size = 0x4, offset = 0x4, fixed_abs, tag = 'smem constant byte address 0x4 - core index']
  #allocation1 [shape = 'u32[144,128]{1,0:T(1,128)}', space=vmem, size = 0x12000, scoped, tag = 'internal scratch']
  %s0 = inlined_call_operand.hbm [shape: f32[16,12], index: 0, kind: input, shape index: {}]
  %s1 = inlined_call_operand.hbm [shape: f32[280,128], index: 1, kind: input, shape index: {}]
  %s2 = inlined_call_operand.hbm [shape: f32[16,128], index: 2, kind: output, shape index: {}]
  %s3 = sld [smem:[#allocation0]]
  $region49: #{_forward_padded.1} parent=0
    _
  %s5 = ssub.s32 1, %s3
  %s6 = scalar_select 0, %s5, %s3
  $region1: #{_forward_padded.1} parent=0
    #allocation2 [shape = 'u8[8192]{0}', space=vmem, size = 0x2000, scoped, tag = 'input window, operand 0']
    #allocation3 [shape = 's32[2]{0}', space=sflag, size = 0x8, scoped, tag = 'scoped memory for _forward_padded.1']
    #allocation4 [shape = 's32[2]{0}', space=sflag, size = 0x8, scoped, tag = 'scoped memory for _forward_padded.1']
    #allocation5 [shape = 'u8[143360]{0}', space=vmem, size = 0x23000, scoped, tag = 'input window, operand 1, single buffered']
    #allocation6 [shape = 's32[1]{0}', space=sflag, size = 0x4, scoped, tag = 'scoped memory for _forward_padded.1']
    #allocation7 [shape = 'u8[8192]{0}', space=vmem, size = 0x2000, scoped, tag = 'output window, operand 0']
    %7 = vsyncpa [#allocation3], 0
    %s8 = scalar_lea.sflag [#allocation3], 1
    %9 = vsyncpa %s8, 0
    %10 = vsyncpa [#allocation6], 0
    %11 = vsyncpa [#allocation4], 0
    %s12 = scalar_lea.sflag [#allocation4], 1
    %13 = vsyncpa %s12, 0
    loop: start=0, step=1, limit=4
    $region2: #{_forward_padded.1} parent=1 // loop_pre_header
      _
    $region3: #{_forward_padded.1} parent=1 // loop_header
      %s15 = sphi 0, %s19
      %p16 = scmp.ge.s32.totalorder %s15, 4
      %s25 = sphi 0, %s27
      %s28 = sphi 0, %s25
      %s29 = sphi 0, %s28
      %s45 = sphi 0, %s29
      %s49 = sphi 0, %s49
      %s51 = sphi 0, %s49
      %s52 = sphi 0, %s51
      %s66 = sphi 0, %s52
      %s72 = sphi 0, %s74
      %s75 = sphi 0, %s72
      %s76 = sphi 0, %s75
      %s92 = sphi 0, %s76
    $region4: #{_forward_padded.1} parent=1 // loop_header_branch
      %18 = sbr.rel (%p16) target = $region8
    $region5: #{_forward_padded.1} parent=1 // loop_body
      %s20 = ssub.s32 %s15, 1
      %s21 = ssub.s32 %s15, 2
      %s22 = sadd.s32 %s15, 1
      %s23 = ssub.s32 %s15, %s22
      %p24 = scmp.eq.s32.totalorder %s23, 0
      %s26 = sadd.s32 %s25, 1
      %s27 = scalar_select %p24, %s25, %s26
      %p30 = pneg %p24
      %p31 = scmp.eq.s32.totalorder %s15, 1
      %p32 = por %p30, %p31
      %p33 = scmp.ne.s32.totalorder %s25, %s28
      %p34 = scmp.eq.s32.totalorder %s15, 0
      %p35 = por %p33, %p34
      %p36 = scmp.ne.s32.totalorder %s25, %s28
      %p37 = scmp.eq.s32.totalorder %s20, 1
      %p38 = por %p36, %p37
      %p39 = scmp.ne.s32.totalorder %s28, %s29
      %p40 = scmp.eq.s32.totalorder %s20, 0
      %p41 = por %p39, %p40
      %p42 = scmp.ne.s32.totalorder %s28, %s29
      %p43 = scmp.eq.s32.totalorder %s21, 1
      %p44 = por %p42, %p43
      %p46 = scmp.ne.s32.totalorder %s29, %s45
      %p47 = scmp.eq.s32.totalorder %s21, 0
      %p48 = por %p46, %p47
      %s50 = sadd.s32 %s49, 1
      %p53 = scmp.eq.s32.totalorder %s15, 1
      %p54 = scmp.ne.s32.totalorder %s49, %s51
      %p55 = scmp.eq.s32.totalorder %s15, 0
      %p56 = por %p54, %p55
      %p57 = scmp.ne.s32.totalorder %s49, %s51
      %p58 = scmp.eq.s32.totalorder %s20, 1
      %p59 = por %p57, %p58
      %p60 = scmp.ne.s32.totalorder %s51, %s52
      %p61 = scmp.eq.s32.totalorder %s20, 0
      %p62 = por %p60, %p61
      %p63 = scmp.ne.s32.totalorder %s51, %s52
      %p64 = scmp.eq.s32.totalorder %s21, 1
      %p65 = por %p63, %p64
      %p67 = scmp.ne.s32.totalorder %s52, %s66
      %p68 = scmp.eq.s32.totalorder %s21, 0
      %p69 = por %p67, %p68
      %s70 = ssub.s32 %s15, %s22
      %p71 = scmp.eq.s32.totalorder %s70, 0
      %s73 = sadd.s32 %s72, 1
      %s74 = scalar_select %p71, %s72, %s73
      %p77 = pneg %p71
      %p78 = scmp.eq.s32.totalorder %s15, 1
      %p79 = por %p77, %p78
      %p80 = scmp.ne.s32.totalorder %s72, %s75
      %p81 = scmp.eq.s32.totalorder %s15, 0
      %p82 = por %p80, %p81
      %p83 = scmp.ne.s32.totalorder %s72, %s75
      %p84 = scmp.eq.s32.totalorder %s20, 1
      %p85 = por %p83, %p84
      %p86 = scmp.ne.s32.totalorder %s75, %s76
      %p87 = scmp.eq.s32.totalorder %s20, 0
      %p88 = por %p86, %p87
      %p89 = scmp.ne.s32.totalorder %s75, %s76
      %p90 = scmp.eq.s32.totalorder %s21, 1
      %p91 = por %p89, %p90
      %p93 = scmp.ne.s32.totalorder %s76, %s92
      %p94 = scmp.eq.s32.totalorder %s21, 0
      %p95 = por %p93, %p94
      %p96 = scmp.le.s32.totalorder 1, %s15
      %p97 = scmp.lt.s32.totalorder %s15, 3
      %p98 = pnand %p96, %p97
      %p99 = pneg %p98
      // Predicated region
      $region9: #{_forward_padded.1} parent=5 // pred_check
        _
      $region10: #{_forward_padded.1} parent=5 // pred_check_branch
        %101 = sbr.rel (%p98) target = $region12
      $region11: #{_forward_padded.1} parent=5 // pred_region
        %s102 = ssub.s32 %s15, 1
        // Predicated region
        $region13: #{_forward_padded.1} parent=11 // pred_check
          %p103 = pneg %p62
        $region14: #{_forward_padded.1} parent=11 // pred_check_branch
          %105 = sbr.rel (%p103) target = $region16
        $region15: #{_forward_padded.1} parent=11 // pred_region
          %s107 = ssub.s32 4480, 4480
          %108 = vsyncadd [#allocation6], %s107
          %s109 = sshll.u32 [#allocation5], 4
          %s110 = int_to_ptr.vmem [resolvable:$true] %s109
          %115 = dma.hbm_to_vmem [thread:$0]  %s1, 4480, %s110, [#allocation6], 128, 128, 8
        $region16: #{_forward_padded.1} parent=11 // pred_fallthru
          _
      $region12: #{_forward_padded.1} parent=5 // pred_fallthru
        _
      %p116 = scmp.lt.s32.totalorder %s15, 2
      // Predicated region
      $region17: #{_forward_padded.1} parent=5 // pred_check
        %p117 = pneg %p116
      $region18: #{_forward_padded.1} parent=5 // pred_check_branch
        %119 = sbr.rel (%p117) target = $region20
      $region19: #{_forward_padded.1} parent=5 // pred_region
        // Predicated region
        $region21: #{_forward_padded.1} parent=19 // pred_check
          %p120 = pneg %p35
        $region22: #{_forward_padded.1} parent=19 // pred_check_branch
          %122 = sbr.rel (%p120) target = $region24
        $region23: #{_forward_padded.1} parent=19 // pred_region
          %s123 = sand.u32 %s25, 1
          %s124 = scalar_lea.sflag [#allocation3], %s123
          %s125 = sand.u32 %s25, 1
          %s126 = smul.addr %s125, 8
          %s127 = scalar_lea.vmem [#allocation2], %s126
          %s129 = ssub.s32 128, 128
          %130 = vsyncadd %s124, %s129
          %s131 = smul.addr %s15, 128
          %s132 = scalar_lea.hbm %s0, %s131
          %s134 = sshll.u32 %s127, 4
          %s135 = int_to_ptr.vmem [resolvable:$true] %s134
          %137 = dma.hbm_to_vmem [thread:$0]  %s132, 128, %s135, %s124
        $region24: #{_forward_padded.1} parent=19 // pred_fallthru
          _
      $region20: #{_forward_padded.1} parent=5 // pred_fallthru
        _
      %p138 = scmp.le.s32.totalorder 1, %s15
      %p139 = scmp.lt.s32.totalorder %s15, 3
      %p140 = pnand %p138, %p139
      %p141 = pneg %p140
      // Predicated region
      $region25: #{_forward_padded.1} parent=5 // pred_check
        _
      $region26: #{_forward_padded.1} parent=5 // pred_check_branch
        %143 = sbr.rel (%p140) target = $region28
      $region27: #{_forward_padded.1} parent=5 // pred_region
        %s144 = ssub.s32 %s15, 1
        %s145 = sand.u32 %s28, 1
        %s146 = scalar_lea.sflag [#allocation3], %s145
        %s147 = sand.u32 %s28, 1
        %s148 = smul.addr %s147, 8
        %s149 = scalar_lea.vmem [#allocation2], %s148
        // Predicated region
        $region29: #{_forward_padded.1} parent=27 // pred_check
          %p150 = pneg %p41
        $region30: #{_forward_padded.1} parent=27 // pred_check_branch
          %152 = sbr.rel (%p150) target = $region32
        $region31: #{_forward_padded.1} parent=27 // pred_region
          %153 = dma.done %s146, 128
        $region32: #{_forward_padded.1} parent=27 // pred_fallthru
          _
        // Predicated region
        $region33: #{_forward_padded.1} parent=27 // pred_check
          %p154 = pneg %p62
        $region34: #{_forward_padded.1} parent=27 // pred_check_branch
          %156 = sbr.rel (%p154) target = $region36
        $region35: #{_forward_padded.1} parent=27 // pred_region
          %157 = dma.done [#allocation6], 4480
        $region36: #{_forward_padded.1} parent=27 // pred_fallthru
          _
        %s158 = sand.u32 %s28, 1
        %s159 = scalar_lea.sflag [#allocation3], %s158
        %s160 = sand.u32 %s28, 1
        %s161 = smul.addr %s160, 8
        %s162 = scalar_lea.vmem [#allocation2], %s161
        %p163 = pneg %p41
        %p164 = pneg %p38
        %p165 = pneg %p62
        %p166 = pneg %p59
        %p167 = pneg %p88
        %p168 = pneg %p85
        %s169 = sand.u32 %s75, 1
        %s170 = scalar_lea.sflag [#allocation4], %s169
        %s171 = sand.u32 %s75, 1
        %s172 = smul.addr %s171, 8
        %s173 = scalar_lea.vmem [#allocation7], %s172
        %v174 = vld [vmem:[%s149] sm:$0xff]
        %v175 = vld [vmem:[#allocation5] sm:$0xff]
        %v176 = vld [vmem:[#allocation5 + $0x8] sm:$0xf]
        %v177 = vld [vmem:[#allocation5 + $0x10] sm:$0xff]
        %v178 = vld [vmem:[#allocation5 + $0x18] sm:$0xff]
        %v179 = vld [vmem:[#allocation5 + $0x20] sm:$0xff]
        %v180 = vld [vmem:[#allocation5 + $0x28] sm:$0xff]
        %v181 = vld [vmem:[#allocation5 + $0x30] sm:$0xff]
        %v182 = vld [vmem:[#allocation5 + $0x38] sm:$0xff]
        %v183 = vld [vmem:[#allocation5 + $0x40] sm:$0xff]
        %v184 = vld [vmem:[#allocation5 + $0x48] sm:$0xff]
        %v185 = vld [vmem:[#allocation5 + $0x50] sm:$0xff]
        %v186 = vld [vmem:[#allocation5 + $0x58] sm:$0xff]
        %v187 = vld [vmem:[#allocation5 + $0x60] sm:$0xff]
        %v188 = vld [vmem:[#allocation5 + $0x68] sm:$0xff]
        %v189 = vld [vmem:[#allocation5 + $0x70] sm:$0xff]
        %v190 = vld [vmem:[#allocation5 + $0x78] sm:$0xff]
        %v191 = vld [vmem:[#allocation5 + $0x80] sm:$0xff]
        %v192 = vld [vmem:[#allocation5 + $0x88] sm:$0xff]
        %v193 = vld [vmem:[#allocation5 + $0x90] sm:$0xff]
        %v194 = vld [vmem:[#allocation5 + $0x98] sm:$0xff]
        %v195 = vld [vmem:[#allocation5 + $0xa0] sm:$0xff]
        %v196 = vld [vmem:[#allocation5 + $0xa8] sm:$0xff]
        %v197 = vld [vmem:[#allocation5 + $0xb0] sm:$0xff]
        %v198 = vld [vmem:[#allocation5 + $0xb8] sm:$0xff]
        %v199 = vld [vmem:[#allocation5 + $0xc0] sm:$0xff]
        %v200 = vld [vmem:[#allocation5 + $0xc8] sm:$0xff]
        %v201 = vld [vmem:[#allocation5 + $0xd0] sm:$0xff]
        %v202 = vld [vmem:[#allocation5 + $0xd8] sm:$0xff]
        %v203 = vld [vmem:[#allocation5 + $0xe0] sm:$0xff]
        %v204 = vld [vmem:[#allocation5 + $0xe8] sm:$0xff]
        %v205 = vld [vmem:[#allocation5 + $0xf0] sm:$0xff]
        %v206 = vld [vmem:[#allocation5 + $0xf8] sm:$0xff]
        %v207 = vld [vmem:[#allocation5 + $0x100] sm:$0xff]
        %v208 = vld [vmem:[#allocation5 + $0x108] sm:$0xff]
        %v209 = vld [vmem:[#allocation5 + $0x110] sm:$0xff]
        %v210 = vlaneseq
        %v211 = vshrl.u32 %v210, 7
        %v212 = vsub.s32 0, %v211
        %v213 = vrot.slane %v209, %v212
        %vm214 = vcmask 97280
        %v216 = vsel %vm214, %v174, 0
        %vm218 = vcmask 1043456
        %v220 = vsel %vm218, %v176, 0
        %222 = vmatprep.subr.mxu0 0.0
        %223 = vmatpush1.msra.mxu0 0.0
        %224 = vmatprep.subr.mxu0 0.0
        %225 = vmatpush1.msra.mxu0 0.0
        %226 = vmatprep.subr.mxu0 0.0
        %227 = vmatpush1.msra.mxu0 0.0
        %228 = vmatprep.subr.mxu0 0.0
        %229 = vmatpush1.msra.mxu0 0.0
        %230 = vmatprep.subr.mxu0 0.0
        %231 = vmatpush1.msra.mxu0 0.0
        %232 = vmatprep.subr.mxu0 0.0
        %233 = vmatpush1.msra.mxu0 0.0
        %234 = vmatprep.subr.mxu0 0.0
        %235 = vmatpush1.msra.mxu0 0.0
        %236 = vmatprep.subr.mxu0 0.0
        %237 = vmatpush1.msra.mxu0 0.0
        %238 = vmatprep.subr.mxu0 0.0
        %239 = vmatpush1.msra.mxu0 0.0
        %240 = vmatprep.subr.mxu0 0.0
        %241 = vmatpush1.msra.mxu0 0.0
        %242 = vmatprep.subr.mxu0 0.0
        %243 = vmatpush1.msra.mxu0 0.0
        %244 = vmatprep.subr.mxu0 0.0
        %245 = vmatpush1.msra.mxu0 0.0
        %246 = vmatprep.subr.mxu0 0.0
        %247 = vmatpush1.msra.mxu0 0.0
        %248 = vmatprep.subr.mxu0 0.0
        %249 = vmatpush1.msra.mxu0 0.0
        %250 = vmatprep.subr.mxu0 0.0
        %251 = vmatpush1.msra.mxu0 %v220
        %252 = vmatprep.subr.mxu0 0.0
        %253 = vmatpush1.msra.mxu0 %v175
        %254 = vmatprep.subr.mxu0 0.0
        %255 = vmatpush2.msra.mxu0 0.0
        %256 = vmatprep.subr.mxu0 0.0
        %257 = vmatpush2.msra.mxu0 0.0
        %258 = vmatprep.subr.mxu0 0.0
        %259 = vmatpush2.msra.mxu0 0.0
        %260 = vmatprep.subr.mxu0 0.0
        %261 = vmatpush2.msra.mxu0 0.0
        %262 = vmatprep.subr.mxu0 0.0
        %263 = vmatpush2.msra.mxu0 0.0
        %264 = vmatprep.subr.mxu0 0.0
        %265 = vmatpush2.msra.mxu0 0.0
        %266 = vmatprep.subr.mxu0 0.0
        %267 = vmatpush2.msra.mxu0 0.0
        %268 = vmatprep.subr.mxu0 0.0
        %269 = vmatpush2.msra.mxu0 0.0
        %270 = vmatprep.subr.mxu0 0.0
        %271 = vmatpush2.msra.mxu0 0.0
        %272 = vmatprep.subr.mxu0 0.0
        %273 = vmatpush2.msra.mxu0 0.0
        %274 = vmatprep.subr.mxu0 0.0
        %275 = vmatpush2.msra.mxu0 0.0
        %276 = vmatprep.subr.mxu0 0.0
        %277 = vmatpush2.msra.mxu0 0.0
        %278 = vmatprep.subr.mxu0 0.0
        %279 = vmatpush2.msra.mxu0 0.0
        %280 = vmatprep.subr.mxu0 0.0
        %281 = vmatpush2.msra.mxu0 0.0
        %282 = vmatprep.subr.mxu0 0.0
        %283 = vmatpush2.msra.mxu0 0.0
        %284 = vmatprep.subr.mxu0 0.0
        %285 = vmatpush2.msra.mxu0 0.0
        %286 = vmatprep.mubr.f32.mxu0 0.0
        %287 = vmatmul.mubr.f32.gmra.mxu0 %v216
        %v288 = vpop.f32.mrf.mxu0
        %v289 = vadd.f32 %v213, %v288
        %v290 = vpop.f32.mrf.mxu0
        %291 = vdwg.mxu0
        %v292 = vmax.f32 %v289, 0.0
        %v293 = vlaneseq
        %v294 = vshrl.u32 %v293, 7
        %v295 = vsub.s32 1, %v294
        %v296 = vrot.slane %v209, %v295
        %297 = vmatprep.subr.mxu0 0.0
        %298 = vmatpush1.msra.mxu0 %v192
        %299 = vmatprep.subr.mxu0 0.0
        %300 = vmatpush1.msra.mxu0 %v191
        %301 = vmatprep.subr.mxu0 0.0
        %302 = vmatpush1.msra.mxu0 %v190
        %303 = vmatprep.subr.mxu0 0.0
        %304 = vmatpush1.msra.mxu0 %v189
        %305 = vmatprep.subr.mxu0 0.0
        %306 = vmatpush1.msra.mxu0 %v188
        %307 = vmatprep.subr.mxu0 0.0
        %308 = vmatpush1.msra.mxu0 %v187
        %309 = vmatprep.subr.mxu0 0.0
        %310 = vmatpush1.msra.mxu0 %v186
        %311 = vmatprep.subr.mxu0 0.0
        %312 = vmatpush1.msra.mxu0 %v185
        %313 = vmatprep.subr.mxu0 0.0
        %314 = vmatpush1.msra.mxu0 %v184
        %315 = vmatprep.subr.mxu0 0.0
        %316 = vmatpush1.msra.mxu0 %v183
        %317 = vmatprep.subr.mxu0 0.0
        %318 = vmatpush1.msra.mxu0 %v182
        %319 = vmatprep.subr.mxu0 0.0
        %320 = vmatpush1.msra.mxu0 %v181
        %321 = vmatprep.subr.mxu0 0.0
        %322 = vmatpush1.msra.mxu0 %v180
        %323 = vmatprep.subr.mxu0 0.0
        %324 = vmatpush1.msra.mxu0 %v179
        %325 = vmatprep.subr.mxu0 0.0
        %326 = vmatpush1.msra.mxu0 %v178
        %327 = vmatprep.subr.mxu0 0.0
        %328 = vmatpush1.msra.mxu0 %v177
        %329 = vmatprep.subr.mxu0 0.0
        %330 = vmatpush2.msra.mxu0 0.0
        %331 = vmatprep.subr.mxu0 0.0
        %332 = vmatpush2.msra.mxu0 0.0
        %333 = vmatprep.subr.mxu0 0.0
        %334 = vmatpush2.msra.mxu0 0.0
        %335 = vmatprep.subr.mxu0 0.0
        %336 = vmatpush2.msra.mxu0 0.0
        %337 = vmatprep.subr.mxu0 0.0
        %338 = vmatpush2.msra.mxu0 0.0
        %339 = vmatprep.subr.mxu0 0.0
        %340 = vmatpush2.msra.mxu0 0.0
        %341 = vmatprep.subr.mxu0 0.0
        %342 = vmatpush2.msra.mxu0 0.0
        %343 = vmatprep.subr.mxu0 0.0
        %344 = vmatpush2.msra.mxu0 0.0
        %345 = vmatprep.subr.mxu0 0.0
        %346 = vmatpush2.msra.mxu0 0.0
        %347 = vmatprep.subr.mxu0 0.0
        %348 = vmatpush2.msra.mxu0 0.0
        %349 = vmatprep.subr.mxu0 0.0
        %350 = vmatpush2.msra.mxu0 0.0
        %351 = vmatprep.subr.mxu0 0.0
        %352 = vmatpush2.msra.mxu0 0.0
        %353 = vmatprep.subr.mxu0 0.0
        %354 = vmatpush2.msra.mxu0 0.0
        %355 = vmatprep.subr.mxu0 0.0
        %356 = vmatpush2.msra.mxu0 0.0
        %357 = vmatprep.subr.mxu0 0.0
        %358 = vmatpush2.msra.mxu0 0.0
        %359 = vmatprep.subr.mxu0 0.0
        %360 = vmatpush2.msra.mxu0 0.0
        %361 = vmatprep.mubr.f32.mxu0 0.0
        %362 = vmatmul.mubr.f32.gmra.mxu0 %v292
        %v363 = vpop.f32.mrf.mxu0
        %v364 = vadd.f32 %v296, %v363
        %v365 = vpop.f32.mrf.mxu0
        %366 = vdwg.mxu0
        %v367 = vmax.f32 %v364, 0.0
        %v368 = vlaneseq
        %v369 = vshrl.u32 %v368, 7
        %v370 = vsub.s32 2, %v369
        %v371 = vrot.slane %v209, %v370
        %372 = vmatprep.subr.mxu0 0.0
        %373 = vmatpush1.msra.mxu0 %v208
        %374 = vmatprep.subr.mxu0 0.0
        %375 = vmatpush1.msra.mxu0 %v207
        %376 = vmatprep.subr.mxu0 0.0
        %377 = vmatpush1.msra.mxu0 %v206
        %378 = vmatprep.subr.mxu0 0.0
        %379 = vmatpush1.msra.mxu0 %v205
        %380 = vmatprep.subr.mxu0 0.0
        %381 = vmatpush1.msra.mxu0 %v204
        %382 = vmatprep.subr.mxu0 0.0
        %383 = vmatpush1.msra.mxu0 %v203
        %384 = vmatprep.subr.mxu0 0.0
        %385 = vmatpush1.msra.mxu0 %v202
        %386 = vmatprep.subr.mxu0 0.0
        %387 = vmatpush1.msra.mxu0 %v201
        %388 = vmatprep.subr.mxu0 0.0
        %389 = vmatpush1.msra.mxu0 %v200
        %390 = vmatprep.subr.mxu0 0.0
        %391 = vmatpush1.msra.mxu0 %v199
        %392 = vmatprep.subr.mxu0 0.0
        %393 = vmatpush1.msra.mxu0 %v198
        %394 = vmatprep.subr.mxu0 0.0
        %395 = vmatpush1.msra.mxu0 %v197
        %396 = vmatprep.subr.mxu0 0.0
        %397 = vmatpush1.msra.mxu0 %v196
        %398 = vmatprep.subr.mxu0 0.0
        %399 = vmatpush1.msra.mxu0 %v195
        %400 = vmatprep.subr.mxu0 0.0
        %401 = vmatpush1.msra.mxu0 %v194
        %402 = vmatprep.subr.mxu0 0.0
        %403 = vmatpush1.msra.mxu0 %v193
        %404 = vmatprep.subr.mxu0 0.0
        %405 = vmatpush2.msra.mxu0 0.0
        %406 = vmatprep.subr.mxu0 0.0
        %407 = vmatpush2.msra.mxu0 0.0
        %408 = vmatprep.subr.mxu0 0.0
        %409 = vmatpush2.msra.mxu0 0.0
        %410 = vmatprep.subr.mxu0 0.0
        %411 = vmatpush2.msra.mxu0 0.0
        %412 = vmatprep.subr.mxu0 0.0
        %413 = vmatpush2.msra.mxu0 0.0
        %414 = vmatprep.subr.mxu0 0.0
        %415 = vmatpush2.msra.mxu0 0.0
        %416 = vmatprep.subr.mxu0 0.0
        %417 = vmatpush2.msra.mxu0 0.0
        %418 = vmatprep.subr.mxu0 0.0
        %419 = vmatpush2.msra.mxu0 0.0
        %420 = vmatprep.subr.mxu0 0.0
        %421 = vmatpush2.msra.mxu0 0.0
        %422 = vmatprep.subr.mxu0 0.0
        %423 = vmatpush2.msra.mxu0 0.0
        %424 = vmatprep.subr.mxu0 0.0
        %425 = vmatpush2.msra.mxu0 0.0
        %426 = vmatprep.subr.mxu0 0.0
        %427 = vmatpush2.msra.mxu0 0.0
        %428 = vmatprep.subr.mxu0 0.0
        %429 = vmatpush2.msra.mxu0 0.0
        %430 = vmatprep.subr.mxu0 0.0
        %431 = vmatpush2.msra.mxu0 0.0
        %432 = vmatprep.subr.mxu0 0.0
        %433 = vmatpush2.msra.mxu0 0.0
        %434 = vmatprep.subr.mxu0 0.0
        %435 = vmatpush2.msra.mxu0 0.0
        %436 = vmatprep.mubr.f32.mxu0 0.0
        %437 = vmatmul.mubr.f32.gmra.mxu0 %v367
        %v438 = vpop.f32.mrf.mxu0
        %v439 = vadd.f32 %v371, %v438
        %v440 = vpop.f32.mrf.mxu0
        %441 = vdwg.mxu0
        %442 = vst [vmem:[%s173] sm:$0xff] %v439
        %s443 = sand.u32 %s75, 1
        %s444 = scalar_lea.sflag [#allocation4], %s443
        %s445 = sand.u32 %s75, 1
        %s446 = smul.addr %s445, 8
        %s447 = scalar_lea.vmem [#allocation7], %s446
        // Predicated region
        $region37: #{_forward_padded.1} parent=27 // pred_check
          %p448 = pneg %p85
        $region38: #{_forward_padded.1} parent=27 // pred_check_branch
          %450 = sbr.rel (%p448) target = $region40
        $region39: #{_forward_padded.1} parent=27 // pred_region
          %s452 = ssub.s32 128, 128
          %453 = vsyncadd %s444, %s452
          %s454 = smul.addr %s20, 128
          %s455 = scalar_lea.hbm %s2, %s454
          %s457 = sshll.u32 %s447, 4
          %s458 = int_to_ptr.vmem [resolvable:$true] %s457
          %460 = dma.vmem_to_hbm [thread:$0]  %s458, 128, %s455, %s444
        $region40: #{_forward_padded.1} parent=27 // pred_fallthru
          _
      $region28: #{_forward_padded.1} parent=5 // pred_fallthru
        _
      %p461 = scmp.le.s32.totalorder 2, %s15
      // Predicated region
      $region41: #{_forward_padded.1} parent=5 // pred_check
        %p462 = pneg %p461
      $region42: #{_forward_padded.1} parent=5 // pred_check_branch
        %464 = sbr.rel (%p462) target = $region44
      $region43: #{_forward_padded.1} parent=5 // pred_region
        %s465 = ssub.s32 %s15, 2
        // Predicated region
        $region45: #{_forward_padded.1} parent=43 // pred_check
          %p466 = pneg %p91
        $region46: #{_forward_padded.1} parent=43 // pred_check_branch
          %468 = sbr.rel (%p466) target = $region48
        $region47: #{_forward_padded.1} parent=43 // pred_region
          %s469 = sand.u32 %s76, 1
          %s470 = scalar_lea.sflag [#allocation4], %s469
          %s471 = sand.u32 %s76, 1
          %s472 = smul.addr %s471, 8
          %s473 = scalar_lea.vmem [#allocation7], %s472
          %474 = dma.done %s470, 128
        $region48: #{_forward_padded.1} parent=43 // pred_fallthru
          _
      $region44: #{_forward_padded.1} parent=5 // pred_fallthru
        _
    $region6: #{_forward_padded.1} parent=1 // loop_footer
      %s19 = sadd.s32 1, %s15
    $region7: #{_forward_padded.1} parent=1 // loop_footer_branch
      %14 = sbr.rel target = $region3
    $region8: #{_forward_padded.1} parent=1 // loop_exit
      _
    %475 = vsyncpa [#allocation3], 1
    %s476 = scalar_lea.sflag [#allocation3], 1
    %477 = vsyncpa %s476, 1
    %478 = vsyncpa [#allocation6], 1
    %479 = vsyncpa [#allocation4], 1
    %s480 = scalar_lea.sflag [#allocation4], 1
    %481 = vsyncpa %s480, 1

</llo_original>
